<compile_context>
chip_gen: v7x
topology: tpu7x:2x2x1
jax: 0.10.0
libtpu: 0.0.40
codegen_flags: <defaults>
</compile_context>

<pallas_src>
import functools

import jax
import jax.numpy as jnp
from jax.experimental import pallas as pl
from jax.experimental.pallas import tpu as pltpu


_TR_MAX = 4096   # max rows per lane-dense tile (multiple of 8)
_EPS = 1e-15     # matches the PyTorch reference (f32: -log(0)=inf if inter==0)


def _centercrop(image, w, h):
    # image: (N, C, Ht, Wt) -> crop spatial dims to (h, w), like the PyTorch ref
    _, _, ht, wt = image.shape
    padw, padh = (wt - w) // 2, (ht - h) // 2
    if padw > 0 and padh > 0:
        image = image[:, :, padh:ht - padh, padw:wt - padw]
    return image


def _dice_kernel(pred_ref, true_ref, out_ref, *,
                 rows, tr, lanes, acc_sub, need_mask):
    # pred_ref / true_ref: (tr, lanes) tiles of the selected channel (native dtype).
    # out_ref: (2, acc_sub, lanes) f32 per-batch partials, resident across the
    #          row-tile axis: [0]=sum(p*t) (intersection), [1]=sum(p+t).
    r = pl.program_id(1)

    @pl.when(r == 0)
    def _():
        out_ref[...] = jnp.zeros_like(out_ref)

    x = pred_ref[...].astype(jnp.float32)
    t_raw = true_ref[...].astype(jnp.float32)

    # sigmoid: exp lands on the EUP slot; exact reciprocal kept for precision
    # (kernel is DMA-bound on v5e/v6e, so it costs nothing there).
    p = pl.reciprocal(1.0 + jnp.exp(-x), approx=False)
    # Exact float compare mirrors the PyTorch `(y_true == 1).float()`.
    t = (t_raw == 1.0).astype(jnp.float32)

    def reduce_rows(v):
        # (tr, lanes) -> (acc_sub, lanes): pure-VPU vreg combine when tr % 8 == 0
        # (the reshape is the native vreg decomposition), otherwise a plain
        # sublane reduce.
        if acc_sub == 8:
            return jnp.sum(v.reshape(tr // 8, 8, lanes), axis=0)
        return jnp.sum(v, axis=0, keepdims=True)

    def accumulate(p_v, t_v):
        out_ref[0] += reduce_rows(p_v * t_v)   # intersection
        out_ref[1] += reduce_rows(p_v + t_v)   # sum(pred) + sum(target)

    if need_mask:
        # Only the last row-tile is partial; keep the mask ops off the bulk tiles.
        is_last = r == pl.num_programs(1) - 1

        @pl.when(is_last)
        def _():
            row_ids = r * tr + jax.lax.broadcasted_iota(jnp.int32, p.shape, 0)
            valid = row_ids < rows
            accumulate(jnp.where(valid, p, 0.0), jnp.where(valid, t, 0.0))

        @pl.when(jnp.logical_not(is_last))
        def _():
            accumulate(p, t)
    else:
        accumulate(p, t)


@functools.partial(jax.jit, static_argnames=("classe", "tr_max"))
def blog_dice_loss(y_pred, y_true, classe=1, *, tr_max=_TR_MAX):
    """Pallas TPU implementation of BLogDiceLoss.forward (NCHW inputs)."""
    n, ch, h, w = y_pred.shape
    y_true = _centercrop(y_true, w, h)

    total = h * w
    if total % 128 == 0:
        rows, lanes = total // 128, 128     # lane-dense slab (free reshape)
    else:
        # TODO(synk): H*W not a multiple of 128 keeps the W-wide
        # (lane-underfilled) layout to avoid a wrapper-side pad/staging copy.
        rows, lanes = h, w

    yp = y_pred.reshape(n, ch, rows, lanes)
    yt = y_true.reshape(n, ch, rows, lanes)

    # Row-tile size: biggest tile within ~tr_max*128 elements per buffer,
    # multiple of 8 when tiled, or the full row extent when it fits.
    budget_rows = max(8, (tr_max * 128 // max(lanes, 1)) // 8 * 8)
    tr = rows if rows <= budget_rows else budget_rows
    acc_sub = 8 if tr % 8 == 0 else 1
    n_rt = pl.cdiv(rows, tr)
    need_mask = (rows % tr) != 0

    kernel = functools.partial(_dice_kernel, rows=rows, tr=tr, lanes=lanes,
                               acc_sub=acc_sub, need_mask=need_mask)
    in_idx = lambda b, r: (b, classe, r, 0)     # channel selected in the index_map
    out_idx = lambda b, r: (b, 0, 0, 0)         # resident across the r axis

    partials = pl.pallas_call(
        kernel,
        out_shape=jax.ShapeDtypeStruct((n, 2, acc_sub, lanes), jnp.float32),
        grid_spec=pltpu.PrefetchScalarGridSpec(
            num_scalar_prefetch=0,
            grid=(n, n_rt),
            in_specs=[
                pl.BlockSpec((None, None, tr, lanes), in_idx),
                pl.BlockSpec((None, None, tr, lanes), in_idx),
            ],
            out_specs=pl.BlockSpec((None, 2, acc_sub, lanes), out_idx),
        ),
        compiler_params=pltpu.CompilerParams(
            # Batch axis parallel (v7x megacore); row-tile axis must stay
            # serial because the output block accumulates across it.
            dimension_semantics=("parallel", "arbitrary"),
            vmem_limit_bytes=32 * 1024 * 1024,
        ),
    )(yp, yt)

    # Tiny cross-batch finalize in plain JAX (n*2*acc_sub*lanes f32 elements).
    intersection = jnp.sum(partials[:, 0])
    union = jnp.sum(partials[:, 1]) + _EPS
    return -jnp.log(2.0 * intersection / union)


def _reference(y_pred, y_true, classe=1):
    # Pure-JAX reference mirroring the PyTorch forward.
    n, ch, h, w = y_pred.shape
    y_true = _centercrop(y_true, w, h)
    y_pred = jax.nn.sigmoid(y_pred.astype(jnp.float32))
    eps = 1e-15
    tgt = (y_true[:, classe, ...] == 1).astype(jnp.float32)
    out = y_pred[:, classe, ...]
    inter = jnp.sum(out * tgt)
    union = jnp.sum(out) + jnp.sum(tgt) + eps
    return -jnp.log(2 * inter / union)


if __name__ == "__main__":
    key = jax.random.PRNGKey(0)
    k1, k2, k3, k4 = jax.random.split(key, 4)

    # Primary case: NCHW = (2, 4, 16, 16)  (lane-dense path: H*W = 256)
    N, C, H, W = 2, 4, 16, 16
    y_pred = jax.random.normal(k1, (N, C, H, W), dtype=jnp.float32)
    y_true = jax.random.randint(k2, (N, C, H, W), 0, 3).astype(jnp.float32)

    loss = jax.block_until_ready(blog_dice_loss(y_pred, y_true, classe=1))
    ref = _reference(y_pred, y_true, classe=1)
    assert jnp.allclose(loss, ref, rtol=1e-4, atol=1e-4), (loss, ref)

    # Non-multiple-of-128 spatial path (W-wide fallback layout).
    yp2 = jax.random.normal(k3, (2, 3, 10, 12), dtype=jnp.float32)
    yt2 = jax.random.randint(k4, (2, 3, 10, 12), 0, 3).astype(jnp.float32)
    l2 = jax.block_until_ready(blog_dice_loss(yp2, yt2, classe=2))
    r2 = _reference(yp2, yt2, classe=2)
    assert jnp.allclose(l2, r2, rtol=1e-4, atol=1e-4), (l2, r2)

    # centercrop path: y_true spatially larger than y_pred.
    yp3 = jax.random.normal(k1, (1, 2, 16, 16), dtype=jnp.float32)
    yt3 = jax.random.randint(k2, (1, 2, 24, 24), 0, 3).astype(jnp.float32)
    l3 = jax.block_until_ready(blog_dice_loss(yp3, yt3, classe=0))
    r3 = _reference(yp3, yt3, classe=0)
    assert jnp.allclose(l3, r3, rtol=1e-4, atol=1e-4), (l3, r3)

    # Multi-tile + masked partial last tile + vreg reshape-reduce path
    # (tr_max shrunk to force rows=18 -> tiles of 8 rows, 2-row tail mask).
    yp4 = jax.random.normal(k3, (2, 2, 48, 48), dtype=jnp.float32)
    yt4 = jax.random.randint(k4, (2, 2, 48, 48), 0, 3).astype(jnp.float32)
    l4 = jax.block_until_ready(blog_dice_loss(yp4, yt4, classe=1, tr_max=8))
    r4 = _reference(yp4, yt4, classe=1)
    assert jnp.allclose(l4, r4, rtol=1e-4, atol=1e-4), (l4, r4)

    # bf16 inputs stream at half the HBM bytes; kernel casts internally.
    l5 = jax.block_until_ready(
        blog_dice_loss(y_pred.astype(jnp.bfloat16),
                       y_true.astype(jnp.bfloat16), classe=1))
    r5 = _reference(y_pred.astype(jnp.bfloat16),
                    y_true.astype(jnp.bfloat16), classe=1)
    assert jnp.allclose(l5, r5, rtol=1e-4, atol=1e-4), (l5, r5)

    print("KERNEL_OK")
</pallas_src>

<mosaic_0001>
module attributes {stable_mosaic.version = 11 : i64} {
  func.func @_dice_kernel(%arg0: i32, %arg1: i32, %arg2: memref<1x1x2x128xf32, #tpu.memory_space<vmem>>, %arg3: memref<1x1x2x128xf32, #tpu.memory_space<vmem>>, %arg4: memref<1x2x1x128xf32, #tpu.memory_space<vmem>>) attributes {dimension_semantics = [#tpu.dimension_semantics<parallel>, #tpu.dimension_semantics<arbitrary>], iteration_bounds = array<i64: 2, 1>, scalar_prefetch = 0 : i64, scratch_operands = 0 : i64, tpu.core_type = #tpu.core_type<tc>, window_params = [{transform_indices = @transform_0, window_bounds = array<i64: 1, 1, 2, 128>}, {transform_indices = @transform_1, window_bounds = array<i64: 1, 1, 2, 128>}, {transform_indices = @transform_2, window_bounds = array<i64: 1, 2, 1, 128>}]} {
    %c0_i32 = arith.constant 0 : i32
    %0 = arith.cmpi eq, %arg1, %c0_i32 : i32
    %1 = arith.extui %0 : i1 to i32
    %c0_i32_0 = arith.constant 0 : i32
    %2 = arith.cmpi ne, %1, %c0_i32_0 : i32
    scf.if %2 {
      %cst_27 = arith.constant 0.000000e+00 : f32
      %35 = vector.broadcast %cst_27 : f32 to vector<2x1x128xf32>
      %c0_28 = arith.constant 0 : index
      %c0_29 = arith.constant 0 : index
      %c0_30 = arith.constant 0 : index
      %c0_31 = arith.constant 0 : index
      %36 = vector.load %arg4[%c0_28, %c0_29, %c0_30, %c0_31] : memref<1x2x1x128xf32, #tpu.memory_space<vmem>>, vector<1x2x1x128xf32>
      %37 = vector.shape_cast %36 : vector<1x2x1x128xf32> to vector<2x1x128xf32>
      %38 = vector.shape_cast %35 : vector<2x1x128xf32> to vector<1x2x1x128xf32>
      tpu.vector_store %arg4[%c0_28, %c0_29, %c0_30, %c0_31], %38 {strides = array<i32>} : memref<1x2x1x128xf32, #tpu.memory_space<vmem>>, vector<1x2x1x128xf32>,
    } else {
    }
    %c0 = arith.constant 0 : index
    %c0_1 = arith.constant 0 : index
    %c0_2 = arith.constant 0 : index
    %c0_3 = arith.constant 0 : index
    %3 = vector.load %arg2[%c0, %c0_1, %c0_2, %c0_3] : memref<1x1x2x128xf32, #tpu.memory_space<vmem>>, vector<1x1x2x128xf32>
    %4 = vector.shape_cast %3 : vector<1x1x2x128xf32> to vector<2x128xf32>
    %c0_4 = arith.constant 0 : index
    %c0_5 = arith.constant 0 : index
    %c0_6 = arith.constant 0 : index
    %c0_7 = arith.constant 0 : index
    %5 = vector.load %arg3[%c0_4, %c0_5, %c0_6, %c0_7] : memref<1x1x2x128xf32, #tpu.memory_space<vmem>>, vector<1x1x2x128xf32>
    %6 = vector.shape_cast %5 : vector<1x1x2x128xf32> to vector<2x128xf32>
    %cst = arith.constant 0.000000e+00 : f32
    %7 = vector.broadcast %cst : f32 to vector<2x128xf32>
    %8 = arith.subf %7, %4 : vector<2x128xf32>
    %9 = math.exp %8 : vector<2x128xf32>
    %cst_8 = arith.constant 1.000000e+00 : f32
    %10 = vector.broadcast %cst_8 : f32 to vector<2x128xf32>
    %11 = arith.addf %10, %9 : vector<2x128xf32>
    %12 = tpu.reciprocal %11 : vector<2x128xf32> -> vector<2x128xf32>
    %cst_9 = arith.constant 1.000000e+00 : f32
    %13 = vector.broadcast %cst_9 : f32 to vector<2x128xf32>
    %14 = arith.cmpf oeq, %6, %13 : vector<2x128xf32>
    %15 = arith.extui %14 : vector<2x128xi1> to vector<2x128xi32>
    %16 = arith.sitofp %15 : vector<2x128xi32> to vector<2x128xf32>
    %c0_10 = arith.constant 0 : index
    %c0_11 = arith.constant 0 : index
    %c0_12 = arith.constant 0 : index
    %c0_13 = arith.constant 0 : index
    %17 = vector.load %arg4[%c0_10, %c0_11, %c0_12, %c0_13] : memref<1x2x1x128xf32, #tpu.memory_space<vmem>>, vector<1x1x1x128xf32>
    %18 = vector.shape_cast %17 : vector<1x1x1x128xf32> to vector<1x128xf32>
    %19 = arith.mulf %12, %16 : vector<2x128xf32>
    %cst_14 = arith.constant dense<0.000000e+00> : vector<128xf32>
    %20 = vector.multi_reduction <add>, %19, %cst_14 [0] : vector<2x128xf32> to vector<128xf32>
    %21 = vector.shape_cast %20 : vector<128xf32> to vector<1x128xf32>
    %22 = arith.addf %18, %21 : vector<1x128xf32>
    %c0_15 = arith.constant 0 : index
    %c0_16 = arith.constant 0 : index
    %c0_17 = arith.constant 0 : index
    %c0_18 = arith.constant 0 : index
    %23 = vector.load %arg4[%c0_15, %c0_16, %c0_17, %c0_18] : memref<1x2x1x128xf32, #tpu.memory_space<vmem>>, vector<1x1x1x128xf32>
    %24 = vector.shape_cast %23 : vector<1x1x1x128xf32> to vector<1x128xf32>
    %25 = vector.shape_cast %22 : vector<1x128xf32> to vector<1x1x1x128xf32>
    tpu.vector_store %arg4[%c0_15, %c0_16, %c0_17, %c0_18], %25 {strides = array<i32>} : memref<1x2x1x128xf32, #tpu.memory_space<vmem>>, vector<1x1x1x128xf32>,
    %c0_19 = arith.constant 0 : index
    %c1 = arith.constant 1 : index
    %c0_20 = arith.constant 0 : index
    %c0_21 = arith.constant 0 : index
    %26 = vector.load %arg4[%c0_19, %c1, %c0_20, %c0_21] : memref<1x2x1x128xf32, #tpu.memory_space<vmem>>, vector<1x1x1x128xf32>
    %27 = vector.shape_cast %26 : vector<1x1x1x128xf32> to vector<1x128xf32>
    %28 = arith.addf %12, %16 : vector<2x128xf32>
    %cst_22 = arith.constant dense<0.000000e+00> : vector<128xf32>
    %29 = vector.multi_reduction <add>, %28, %cst_22 [0] : vector<2x128xf32> to vector<128xf32>
    %30 = vector.shape_cast %29 : vector<128xf32> to vector<1x128xf32>
    %31 = arith.addf %27, %30 : vector<1x128xf32>
    %c0_23 = arith.constant 0 : index
    %c1_24 = arith.constant 1 : index
    %c0_25 = arith.constant 0 : index
    %c0_26 = arith.constant 0 : index
    %32 = vector.load %arg4[%c0_23, %c1_24, %c0_25, %c0_26] : memref<1x2x1x128xf32, #tpu.memory_space<vmem>>, vector<1x1x1x128xf32>
    %33 = vector.shape_cast %32 : vector<1x1x1x128xf32> to vector<1x128xf32>
    %34 = vector.shape_cast %31 : vector<1x128xf32> to vector<1x1x1x128xf32>
    tpu.vector_store %arg4[%c0_23, %c1_24, %c0_25, %c0_26], %34 {strides = array<i32>} : memref<1x2x1x128xf32, #tpu.memory_space<vmem>>, vector<1x1x1x128xf32>,
    return
  }
  func.func @transform_0(%arg0: i32, %arg1: i32) -> (i32, i32, i32, i32) {
    %c1_i32 = arith.constant 1 : i32
    %c0_i32 = arith.constant 0 : i32
    %c0_i32_0 = arith.constant 0 : i32
    return %arg0, %c1_i32, %arg1, %c0_i32 : i32, i32, i32, i32
  }
  func.func @transform_1(%arg0: i32, %arg1: i32) -> (i32, i32, i32, i32) {
    %c1_i32 = arith.constant 1 : i32
    %c0_i32 = arith.constant 0 : i32
    %c0_i32_0 = arith.constant 0 : i32
    return %arg0, %c1_i32, %arg1, %c0_i32 : i32, i32, i32, i32
  }
  func.func @transform_2(%arg0: i32, %arg1: i32) -> (i32, i32, i32, i32) {
    %c0_i32 = arith.constant 0 : i32
    %c0_i32_0 = arith.constant 0 : i32
    %c0_i32_1 = arith.constant 0 : i32
    %c0_i32_2 = arith.constant 0 : i32
    return %arg0, %c0_i32, %c0_i32_0, %c0_i32_1 : i32, i32, i32, i32
  }
}

</mosaic_0001>

<llo_original>
// kernel: blog_dice_loss.1
$region0: #{blog_dice_loss.1}
  #allocation0 [shape = 'u32[]', space=smem, size = 0x4, offset = 0x4, fixed_abs, tag = 'smem constant byte address 0x4 - core index']
  #allocation1 [shape = 'u32[144,128]{1,0:T(1,128)}', space=vmem, size = 0x12000, scoped, tag = 'internal scratch']
  %s0 = inlined_call_operand.vmem [shape: f32[2,4,2,128], index: 0, kind: input, shape index: {}]
  %s1 = inlined_call_operand.vmem [shape: f32[2,4,2,128], index: 1, kind: input, shape index: {}]
  %s2 = inlined_call_operand.vmem [shape: f32[2,2,1,128], index: 2, kind: output, shape index: {}]
  %s3 = sld [smem:[#allocation0]]
  $region45: #{blog_dice_loss.1} parent=0
    _
  %s5 = ssub.s32 1, %s3
  %s6 = scalar_select 0, %s5, %s3
  loop: start=0, step=1, limit=4
  $region2: #{blog_dice_loss.1} parent=0 // loop_pre_header
    _
  $region3: #{blog_dice_loss.1} parent=0 // loop_header
    %s8 = sphi 0, %s12
    %p9 = scmp.ge.s32.totalorder %s8, 4
    %s15 = sphi 0, %s27
    %s16 = sphi 0, %s23
    %s17 = sphi 0, %s15
    %s18 = sphi 0, %s16
    %s19 = sphi 0, %s17
    %s20 = sphi 0, %s18
    %s32 = sphi 0, %s34
    %s35 = sphi 0, %s32
    %s36 = sphi 0, %s35
    %s52 = sphi 0, %s36
    %s60 = sphi 0, %s62
    %s63 = sphi 0, %s60
    %s64 = sphi 0, %s63
    %s80 = sphi 0, %s64
    %s86 = sphi 0, %s88
    %s89 = sphi 0, %s86
    %s90 = sphi 0, %s89
    %s106 = sphi 0, %s90
  $region4: #{blog_dice_loss.1} parent=0 // loop_header_branch
    %11 = sbr.rel (%p9) target = $region8
  $region5: #{blog_dice_loss.1} parent=0 // loop_body
    %s13 = ssub.s32 %s8, 1
    %s14 = ssub.s32 %s8, 2
    %s21 = sadd.s32 1, %s16
    %p22 = scmp.ge.s32.totalorder %s21, 1
    %s23 = scalar_select %p22, 0, %s21
    %s24 = sadd.s32 1, %s15
    %s25 = scalar_select %p22, %s24, %s15
    %p26 = scmp.ge.s32.totalorder %s25, 2
    %s27 = scalar_select %p26, 0, %s25
    %s28 = ssub.s32 %s15, %s27
    %s29 = ssub.s32 %s16, %s23
    %s30 = sor.u32 %s28, %s29
    %p31 = scmp.eq.s32.totalorder %s30, 0
    %s33 = sadd.s32 %s32, 1
    %s34 = scalar_select %p31, %s32, %s33
    %p37 = pneg %p31
    %p38 = scmp.eq.s32.totalorder %s8, 1
    %p39 = por %p37, %p38
    %p40 = scmp.ne.s32.totalorder %s32, %s35
    %p41 = scmp.eq.s32.totalorder %s8, 0
    %p42 = por %p40, %p41
    %p43 = scmp.ne.s32.totalorder %s32, %s35
    %p44 = scmp.eq.s32.totalorder %s13, 1
    %p45 = por %p43, %p44
    %p46 = scmp.ne.s32.totalorder %s35, %s36
    %p47 = scmp.eq.s32.totalorder %s13, 0
    %p48 = por %p46, %p47
    %p49 = scmp.ne.s32.totalorder %s35, %s36
    %p50 = scmp.eq.s32.totalorder %s14, 1
    %p51 = por %p49, %p50
    %p53 = scmp.ne.s32.totalorder %s36, %s52
    %p54 = scmp.eq.s32.totalorder %s14, 0
    %p55 = por %p53, %p54
    %s56 = ssub.s32 %s15, %s27
    %s57 = ssub.s32 %s16, %s23
    %s58 = sor.u32 %s56, %s57
    %p59 = scmp.eq.s32.totalorder %s58, 0
    %s61 = sadd.s32 %s60, 1
    %s62 = scalar_select %p59, %s60, %s61
    %p65 = pneg %p59
    %p66 = scmp.eq.s32.totalorder %s8, 1
    %p67 = por %p65, %p66
    %p68 = scmp.ne.s32.totalorder %s60, %s63
    %p69 = scmp.eq.s32.totalorder %s8, 0
    %p70 = por %p68, %p69
    %p71 = scmp.ne.s32.totalorder %s60, %s63
    %p72 = scmp.eq.s32.totalorder %s13, 1
    %p73 = por %p71, %p72
    %p74 = scmp.ne.s32.totalorder %s63, %s64
    %p75 = scmp.eq.s32.totalorder %s13, 0
    %p76 = por %p74, %p75
    %p77 = scmp.ne.s32.totalorder %s63, %s64
    %p78 = scmp.eq.s32.totalorder %s14, 1
    %p79 = por %p77, %p78
    %p81 = scmp.ne.s32.totalorder %s64, %s80
    %p82 = scmp.eq.s32.totalorder %s14, 0
    %p83 = por %p81, %p82
    %s84 = ssub.s32 %s15, %s27
    %p85 = scmp.eq.s32.totalorder %s84, 0
    %s87 = sadd.s32 %s86, 1
    %s88 = scalar_select %p85, %s86, %s87
    %p91 = pneg %p85
    %p92 = scmp.eq.s32.totalorder %s8, 1
    %p93 = por %p91, %p92
    %p94 = scmp.ne.s32.totalorder %s86, %s89
    %p95 = scmp.eq.s32.totalorder %s8, 0
    %p96 = por %p94, %p95
    %p97 = scmp.ne.s32.totalorder %s86, %s89
    %p98 = scmp.eq.s32.totalorder %s13, 1
    %p99 = por %p97, %p98
    %p100 = scmp.ne.s32.totalorder %s89, %s90
    %p101 = scmp.eq.s32.totalorder %s13, 0
    %p102 = por %p100, %p101
    %p103 = scmp.ne.s32.totalorder %s89, %s90
    %p104 = scmp.eq.s32.totalorder %s14, 1
    %p105 = por %p103, %p104
    %p107 = scmp.ne.s32.totalorder %s90, %s106
    %p108 = scmp.eq.s32.totalorder %s14, 0
    %p109 = por %p107, %p108
    %p110 = scmp.le.s32.totalorder 1, %s8
    %p111 = scmp.lt.s32.totalorder %s8, 3
    %p112 = pnand %p110, %p111
    %p113 = pneg %p112
    // Predicated region
    $region9: #{blog_dice_loss.1} parent=5 // pred_check
      _
    $region10: #{blog_dice_loss.1} parent=5 // pred_check_branch
      %115 = sbr.rel (%p112) target = $region12
    $region11: #{blog_dice_loss.1} parent=5 // pred_region
      %s116 = ssub.s32 %s8, 1
    $region12: #{blog_dice_loss.1} parent=5 // pred_fallthru
      _
    %p117 = scmp.lt.s32.totalorder %s8, 2
    // Predicated region
    $region13: #{blog_dice_loss.1} parent=5 // pred_check
      %p118 = pneg %p117
    $region14: #{blog_dice_loss.1} parent=5 // pred_check_branch
      %120 = sbr.rel (%p118) target = $region16
    $region15: #{blog_dice_loss.1} parent=5 // pred_region
      // Predicated region
      $region17: #{blog_dice_loss.1} parent=15 // pred_check
        %p121 = pneg %p42
      $region18: #{blog_dice_loss.1} parent=15 // pred_check_branch
        %123 = sbr.rel (%p121) target = $region20
      $region19: #{blog_dice_loss.1} parent=15 // pred_region
        %p124 = scmp.lt.s32.totalorder %s15, 1
        %s125 = scalar_select %p124, %s15, 1
        %p126 = scmp.lt.s32.totalorder %s16, 0
        %s127 = scalar_select %p126, %s16, 0
        %s128 = sadd.s32 %s127, 1
        %s129 = smul.addr %s125, 4
        %s130 = sadd.s32 %s128, %s129
        %s131 = smul.addr %s130, 2
        %s132 = scalar_lea.vmem %s0, %s131
      $region20: #{blog_dice_loss.1} parent=15 // pred_fallthru
        _
      // Predicated region
      $region21: #{blog_dice_loss.1} parent=15 // pred_check
        %p133 = pneg %p70
      $region22: #{blog_dice_loss.1} parent=15 // pred_check_branch
        %135 = sbr.rel (%p133) target = $region24
      $region23: #{blog_dice_loss.1} parent=15 // pred_region
        %p136 = scmp.lt.s32.totalorder %s15, 1
        %s137 = scalar_select %p136, %s15, 1
        %p138 = scmp.lt.s32.totalorder %s16, 0
        %s139 = scalar_select %p138, %s16, 0
        %s140 = sadd.s32 %s139, 1
        %s141 = smul.addr %s137, 4
        %s142 = sadd.s32 %s140, %s141
        %s143 = smul.addr %s142, 2
        %s144 = scalar_lea.vmem %s1, %s143
      $region24: #{blog_dice_loss.1} parent=15 // pred_fallthru
        _
    $region16: #{blog_dice_loss.1} parent=5 // pred_fallthru
      _
    %p145 = scmp.le.s32.totalorder 1, %s8
    %p146 = scmp.lt.s32.totalorder %s8, 3
    %p147 = pnand %p145, %p146
    %p148 = pneg %p147
    // Predicated region
    $region25: #{blog_dice_loss.1} parent=5 // pred_check
      _
    $region26: #{blog_dice_loss.1} parent=5 // pred_check_branch
      %150 = sbr.rel (%p147) target = $region28
    $region27: #{blog_dice_loss.1} parent=5 // pred_region
      %s151 = ssub.s32 %s8, 1
      %p152 = scmp.lt.s32.totalorder %s17, 1
      %s153 = scalar_select %p152, %s17, 1
      %p154 = scmp.lt.s32.totalorder %s18, 0
      %s155 = scalar_select %p154, %s18, 0
      %s156 = sadd.s32 %s155, 1
      %s157 = smul.addr %s153, 4
      %s158 = sadd.s32 %s156, %s157
      %s159 = smul.addr %s158, 2
      %s160 = scalar_lea.vmem %s0, %s159
      %p161 = pneg %p48
      %p162 = pneg %p45
      %p163 = scmp.lt.s32.totalorder %s17, 1
      %s164 = scalar_select %p163, %s17, 1
      %p165 = scmp.lt.s32.totalorder %s18, 0
      %s166 = scalar_select %p165, %s18, 0
      %s167 = sadd.s32 %s166, 1
      %s168 = smul.addr %s164, 4
      %s169 = sadd.s32 %s167, %s168
      %s170 = smul.addr %s169, 2
      %s171 = scalar_lea.vmem %s1, %s170
      %p172 = pneg %p76
      %p173 = pneg %p73
      %p174 = pneg %p102
      %p175 = pneg %p99
      %p176 = scmp.lt.s32.totalorder %s17, 1
      %s177 = scalar_select %p176, %s17, 1
      %s178 = smul.addr %s177, 2
      %s179 = scalar_lea.vmem %s2, %s178
      %p180 = scmp.lt.s32.totalorder %s17, 1
      %s181 = scalar_select %p180, %s17, 1
      %p182 = scmp.lt.s32.totalorder %s18, 0
      %s183 = scalar_select %p182, %s18, 0
      %s184 = sadd.s32 %s183, 1
      %s185 = smul.addr %s181, 4
      %s186 = sadd.s32 %s184, %s185
      %s187 = smul.addr %s186, 2
      %s188 = scalar_lea.vmem %s0, %s187
      %p189 = scmp.lt.s32.totalorder %s17, 1
      %s190 = scalar_select %p189, %s17, 1
      %p191 = scmp.lt.s32.totalorder %s18, 0
      %s192 = scalar_select %p191, %s18, 0
      %s193 = sadd.s32 %s192, 1
      %s194 = smul.addr %s190, 4
      %s195 = sadd.s32 %s193, %s194
      %s196 = smul.addr %s195, 2
      %s197 = scalar_lea.vmem %s1, %s196
      %p198 = scmp.lt.s32.totalorder %s17, 1
      %s199 = scalar_select %p198, %s17, 1
      %s200 = smul.addr %s199, 2
      %s201 = scalar_lea.vmem %s2, %s200
      %p202 = scmp.eq.s32.totalorder %s18, 0
      // Predicated region
      $region29: #{blog_dice_loss.1} parent=27 // pred_check
        %p203 = pneg %p202
      $region30: #{blog_dice_loss.1} parent=27 // pred_check_branch
        %205 = sbr.rel (%p203) target = $region32
      $region31: #{blog_dice_loss.1} parent=27 // pred_region
        %206 = vst [vmem:[%s201] sm:$0x1] 0.0
        %207 = vst [vmem:[%s201 + $0x1] sm:$0x1] 0.0
      $region32: #{blog_dice_loss.1} parent=27 // pred_fallthru
        _
      %v208 = vld [vmem:[%s188] sm:$0x3]
      %v209 = vld [vmem:[%s197] sm:$0x3]
      %v210 = vsub.f32 0.0, %v208
      %v211 = vmul.f32 %v210, 1.442695
      %v212 = vpow.pop %v211
      %v213 = vadd.f32 %v212, 1.0
      %v214 = vrcp.pop %v213
      %vm215 = vcmp.eq.f32.partialorder %v209, 1.0
      %v216 = vsel %vm215, 1, 0
      %v217 = vcvt.s32.f32 %v216
      %v218 = vld [vmem:[%s201] sm:$0x1]
      %v219 = vmul.f32 %v214, %v217
      %vm220 = vcmask 1041408
      %v221 = vsel %vm220, %v219, 0.0
      %v222 = vrot.slane %v221, 4
      %v223 = vadd.f32 %v221, %v222
      %v224 = vrot.slane %v223, 2
      %v225 = vadd.f32 %v223, %v224
      %v226 = vrot.slane %v225, 1
      %v227 = vadd.f32 %v225, %v226
      %v228 = vadd.f32 %v218, %v227
      %229 = vst [vmem:[%s201] sm:$0x1] %v228
      %s230 = scalar_lea.vmem %s201, 1
      %v231 = vld [vmem:[%s230] sm:$0x1]
      %v232 = vadd.f32 %v214, %v217
      %v233 = vsel %vm220, %v232, 0.0
      %v234 = vrot.slane %v233, 4
      %v235 = vadd.f32 %v233, %v234
      %v236 = vrot.slane %v235, 2
      %v237 = vadd.f32 %v235, %v236
      %v238 = vrot.slane %v237, 1
      %v239 = vadd.f32 %v237, %v238
      %v240 = vadd.f32 %v231, %v239
      %241 = vst [vmem:[%s230] sm:$0x1] %v240
      %p242 = scmp.lt.s32.totalorder %s17, 1
      %s243 = scalar_select %p242, %s17, 1
      %s244 = smul.addr %s243, 2
      %s245 = scalar_lea.vmem %s2, %s244
      // Predicated region
      $region33: #{blog_dice_loss.1} parent=27 // pred_check
        %p246 = pneg %p99
      $region34: #{blog_dice_loss.1} parent=27 // pred_check_branch
        %248 = sbr.rel (%p246) target = $region36
      $region35: #{blog_dice_loss.1} parent=27 // pred_region
        _
      $region36: #{blog_dice_loss.1} parent=27 // pred_fallthru
        _
    $region28: #{blog_dice_loss.1} parent=5 // pred_fallthru
      _
    %p249 = scmp.le.s32.totalorder 2, %s8
    // Predicated region
    $region37: #{blog_dice_loss.1} parent=5 // pred_check
      %p250 = pneg %p249
    $region38: #{blog_dice_loss.1} parent=5 // pred_check_branch
      %252 = sbr.rel (%p250) target = $region40
    $region39: #{blog_dice_loss.1} parent=5 // pred_region
      %s253 = ssub.s32 %s8, 2
      // Predicated region
      $region41: #{blog_dice_loss.1} parent=39 // pred_check
        %p254 = pneg %p105
      $region42: #{blog_dice_loss.1} parent=39 // pred_check_branch
        %256 = sbr.rel (%p254) target = $region44
      $region43: #{blog_dice_loss.1} parent=39 // pred_region
        %p257 = scmp.lt.s32.totalorder %s19, 1
        %s258 = scalar_select %p257, %s19, 1
        %s259 = smul.addr %s258, 2
        %s260 = scalar_lea.vmem %s2, %s259
      $region44: #{blog_dice_loss.1} parent=39 // pred_fallthru
        _
    $region40: #{blog_dice_loss.1} parent=5 // pred_fallthru
      _
  $region6: #{blog_dice_loss.1} parent=0 // loop_footer
    %s12 = sadd.s32 1, %s8
  $region7: #{blog_dice_loss.1} parent=0 // loop_footer_branch
    %7 = sbr.rel target = $region3
  $region8: #{blog_dice_loss.1} parent=0 // loop_exit
    _

</llo_original>
